<compile_context>
chip_gen: v6e
topology: v6e:2x2x1
jax: 0.10.0
libtpu: 0.0.40
codegen_flags: <defaults>
</compile_context>

<pallas_src>
import functools
import math

import jax
import jax.numpy as jnp
from jax.experimental import pallas as pl
from jax.experimental.pallas import tpu as pltpu


# ----------------------------- Pallas kernel ------------------------------

def _graph_attn_kernel(x_ref, w_ref, b_ref, a2_ref, o_ref, *, fout, alpha, beta):
    """Fused GraphAttn forward for one batch element.

    x_ref  : (N, Fin)      bf16   node features
    w_ref  : (Fin, Fout+1) bf16   [W_tran^T | W_tran^T @ w_att1]
    b_ref  : (1, Fout+1)   f32    [b_tran   | b_tran·w_att1 + b_att1]
    a2_ref : (1, N)        f32    row logits  a2[m] = h[m]·w_att2 + b_att2
    o_ref  : (N, Fout)     f32
    """
    # Single MXU pass (bf16 inputs, f32 accumulation) -> [h | a1].
    ha = jnp.dot(x_ref[...], w_ref[...], preferred_element_type=jnp.float32)
    ha = ha + b_ref[...]

    h = ha[:, :fout]                    # (N, Fout) f32
    a1 = ha[:, fout:fout + 1]           # (N, 1)    f32  column logits

    # att[n, m] = a1[n] + a2[m]   — lane broadcast + sublane broadcast.
    att = a1 + a2_ref[...]              # (N, N)

    # LeakyReLU(beta) then numerically-stable row softmax (dim=-1), f32 VPU/EUP.
    att = jnp.where(att >= 0.0, att, beta * att)
    att = att - jnp.max(att, axis=-1, keepdims=True)
    p = jnp.exp(att)
    adj = p * pl.reciprocal(jnp.sum(p, axis=-1, keepdims=True), approx=False)

    # adj @ h on the MXU in bf16 (f32 accumulation), blend in f32.
    mix = jnp.dot(adj.astype(jnp.bfloat16), h.astype(jnp.bfloat16),
                  preferred_element_type=jnp.float32)
    o_ref[...] = (alpha * h + (1.0 - alpha) * mix).astype(o_ref.dtype)


# ------------------------------- wrapper -----------------------------------

def graph_attn_forward(params, x, *, alpha=0.9, beta=0.2):
    """GraphAttn.forward.  x: [B, N, Fin] -> [B, N, Fout]."""
    B, N, Fin = x.shape
    Fout = params['tran_w'].shape[0]

    xf = x.astype(jnp.float32)
    wt = params['tran_w'].T.astype(jnp.float32)              # [Fin, Fout]
    bt = params['tran_b'].astype(jnp.float32)                # [Fout]
    w1 = params['att1_w'].reshape(-1).astype(jnp.float32)    # [Fout]
    w2 = params['att2_w'].reshape(-1).astype(jnp.float32)    # [Fout]
    b1 = params['att1_b'].reshape(()).astype(jnp.float32)
    b2 = params['att2_b'].reshape(()).astype(jnp.float32)

    # Fold att1 into the tran matmul:  a1 = h @ w1 + b1 = x @ (W_t^T w1) + (b_t·w1 + b1).
    w_fused = jnp.concatenate([wt, (wt @ w1)[:, None]], axis=1)      # [Fin, Fout+1]
    b_fused = jnp.concatenate([bt, (bt @ w1 + b1)[None]])[None, :]   # [1, Fout+1]

    # a2 row logits computed in f32 in the wrapper (O(B*N) — layout plumbing so
    # the kernel never needs a (N,1)->(1,N) transpose).
    a2_row = (xf @ (wt @ w2) + (bt @ w2 + b2))[:, None, :]           # [B, 1, N]

    kernel = functools.partial(_graph_attn_kernel,
                               fout=Fout, alpha=float(alpha), beta=float(beta))

    return pl.pallas_call(
        kernel,
        out_shape=jax.ShapeDtypeStruct((B, N, Fout), jnp.float32),
        grid_spec=pltpu.PrefetchScalarGridSpec(
            num_scalar_prefetch=0,
            grid=(B,),
            in_specs=[
                pl.BlockSpec((pl.Squeezed(), N, Fin), lambda b: (b, 0, 0)),
                pl.BlockSpec((Fin, Fout + 1), lambda b: (0, 0)),
                pl.BlockSpec((1, Fout + 1), lambda b: (0, 0)),
                pl.BlockSpec((pl.Squeezed(), 1, N), lambda b: (b, 0, 0)),
            ],
            out_specs=pl.BlockSpec((pl.Squeezed(), N, Fout),
                                   lambda b: (b, 0, 0)),
        ),
        compiler_params=pltpu.CompilerParams(
            dimension_semantics=("parallel",)),
    )(x.astype(jnp.bfloat16), w_fused.astype(jnp.bfloat16), b_fused, a2_row)


# ----------------------------- reference / init ----------------------------

def graph_attn_reference(params, x, *, alpha=0.9, beta=0.2):
    """Pure-JAX f32 reference mirroring the PyTorch forward (B>1, N>1)."""
    h = x @ params['tran_w'].T + params['tran_b']
    a1 = h @ params['att1_w'].T + params['att1_b']            # [B, N, 1]
    a2 = h @ params['att2_w'].T + params['att2_b']            # [B, N, 1]
    att = a1 + jnp.transpose(a2, (0, 2, 1))                   # [B, N, N]
    att = jnp.where(att >= 0.0, att, beta * att)              # LeakyReLU(beta)
    adj = jax.nn.softmax(att, axis=-1)                        # .squeeze() is a no-op here
    return alpha * h + (1.0 - alpha) * jnp.einsum('bnm,bmf->bnf', adj, h)


def init_params(key, in_features, out_features):
    """PyTorch-Linear-style uniform init."""
    ks = jax.random.split(key, 6)

    def linear(kw, kb, fan_in, fan_out):
        bound = 1.0 / math.sqrt(fan_in)
        w = jax.random.uniform(kw, (fan_out, fan_in), jnp.float32, -bound, bound)
        b = jax.random.uniform(kb, (fan_out,), jnp.float32, -bound, bound)
        return w, b

    p = {}
    p['tran_w'], p['tran_b'] = linear(ks[0], ks[1], in_features, out_features)
    p['att1_w'], p['att1_b'] = linear(ks[2], ks[3], out_features, 1)
    p['att2_w'], p['att2_b'] = linear(ks[4], ks[5], out_features, 1)
    return p


# --------------------------------- main -------------------------------------

if __name__ == "__main__":
    B, N = 2, 8                         # batch, number of graph nodes
    in_features, out_features = 32, 128  # 128 -> lane-dense output blocks
    alpha, beta = 0.9, 0.2

    key = jax.random.PRNGKey(0)
    k_x, k_p = jax.random.split(key)
    x = jax.random.normal(k_x, (B, N, in_features), jnp.float32)
    params = init_params(k_p, in_features, out_features)

    out = graph_attn_forward(params, x, alpha=alpha, beta=beta)
    out = jax.block_until_ready(out)

    assert out.shape == (B, N, out_features), out.shape
    assert bool(jnp.all(jnp.isfinite(out)))

    # Loose tolerance: kernel runs the matmuls in bf16 (f32 accumulation).
    ref = graph_attn_reference(params, x, alpha=alpha, beta=beta)
    max_err = float(jnp.max(jnp.abs(out - ref)))
    assert max_err < 5e-2, f"max abs error vs f32 reference: {max_err}"

    print("KERNEL_OK")
</pallas_src>

<mosaic_0001>
module attributes {stable_mosaic.version = 11 : i64} {
  func.func @_graph_attn_kernel(%arg0: i32, %arg1: memref<1x8x32xbf16, #tpu.memory_space<vmem>>, %arg2: memref<32x129xbf16, #tpu.memory_space<vmem>>, %arg3: memref<1x129xf32, #tpu.memory_space<vmem>>, %arg4: memref<1x1x8xf32, #tpu.memory_space<vmem>>, %arg5: memref<1x8x128xf32, #tpu.memory_space<vmem>>) attributes {dimension_semantics = [#tpu.dimension_semantics<parallel>], iteration_bounds = array<i64: 2>, scalar_prefetch = 0 : i64, scratch_operands = 0 : i64, tpu.core_type = #tpu.core_type<tc>, window_params = [{transform_indices = @transform_0, window_bounds = array<i64: 1, 8, 32>}, {pipeline_mode = #tpu.pipeline_mode<synchronous>, transform_indices = @transform_1, window_bounds = array<i64: 32, 129>}, {pipeline_mode = #tpu.pipeline_mode<synchronous>, transform_indices = @transform_2, window_bounds = array<i64: 1, 129>}, {transform_indices = @transform_3, window_bounds = array<i64: 1, 1, 8>}, {transform_indices = @transform_4, window_bounds = array<i64: 1, 8, 128>}]} {
    %c0 = arith.constant 0 : index
    %c0_0 = arith.constant 0 : index
    %c0_1 = arith.constant 0 : index
    %0 = vector.load %arg1[%c0, %c0_0, %c0_1] : memref<1x8x32xbf16, #tpu.memory_space<vmem>>, vector<1x8x32xbf16>
    %1 = vector.shape_cast %0 : vector<1x8x32xbf16> to vector<8x32xbf16>
    %c0_2 = arith.constant 0 : index
    %c0_3 = arith.constant 0 : index
    %2 = vector.load %arg2[%c0_2, %c0_3] : memref<32x129xbf16, #tpu.memory_space<vmem>>, vector<32x129xbf16>
    %cst = arith.constant dense<0.000000e+00> : vector<8x129xf32>
    %3 = tpu.matmul %1, %2, %cst {dimension_numbers = #tpu.dot_dimension_numbers<[1], [0], [0], [1], [0, 0, 1, 1], [], []>} : vector<8x32xbf16>, vector<32x129xbf16>, vector<8x129xf32> -> vector<8x129xf32>
    %c0_4 = arith.constant 0 : index
    %c0_5 = arith.constant 0 : index
    %4 = vector.load %arg3[%c0_4, %c0_5] : memref<1x129xf32, #tpu.memory_space<vmem>>, vector<1x129xf32>
    %5 = vector.broadcast %4 : vector<1x129xf32> to vector<8x129xf32>
    %6 = arith.addf %3, %5 : vector<8x129xf32>
    %7 = vector.extract_strided_slice %6 {offsets = [0, 0], sizes = [8, 128], strides = [1, 1]} : vector<8x129xf32> to vector<8x128xf32>
    %8 = vector.extract_strided_slice %6 {offsets = [0, 128], sizes = [8, 1], strides = [1, 1]} : vector<8x129xf32> to vector<8x1xf32>
    %c0_6 = arith.constant 0 : index
    %c0_7 = arith.constant 0 : index
    %c0_8 = arith.constant 0 : index
    %9 = vector.load %arg4[%c0_6, %c0_7, %c0_8] : memref<1x1x8xf32, #tpu.memory_space<vmem>>, vector<1x1x8xf32>
    %10 = vector.shape_cast %9 : vector<1x1x8xf32> to vector<1x8xf32>
    %11 = vector.broadcast %8 : vector<8x1xf32> to vector<8x8xf32>
    %12 = vector.broadcast %10 : vector<1x8xf32> to vector<8x8xf32>
    %13 = arith.addf %11, %12 : vector<8x8xf32>
    %cst_9 = arith.constant 0.000000e+00 : f32
    %14 = vector.broadcast %cst_9 : f32 to vector<8x8xf32>
    %15 = arith.cmpf oge, %13, %14 : vector<8x8xf32>
    %cst_10 = arith.constant 2.000000e-01 : f32
    %16 = vector.broadcast %cst_10 : f32 to vector<8x8xf32>
    %17 = arith.mulf %16, %13 : vector<8x8xf32>
    %18 = arith.select %15, %13, %17 : vector<8x8xi1>, vector<8x8xf32>
    %cst_11 = arith.constant dense<0xFF800000> : vector<8xf32>
    %19 = vector.multi_reduction <maximumf>, %18, %cst_11 [1] : vector<8x8xf32> to vector<8xf32>
    %20 = vector.shape_cast %19 : vector<8xf32> to vector<8x1xf32>
    %21 = vector.broadcast %20 : vector<8x1xf32> to vector<8x8xf32>
    %22 = arith.subf %18, %21 : vector<8x8xf32>
    %23 = math.exp %22 : vector<8x8xf32>
    %cst_12 = arith.constant dense<0.000000e+00> : vector<8xf32>
    %24 = vector.multi_reduction <add>, %23, %cst_12 [1] : vector<8x8xf32> to vector<8xf32>
    %25 = vector.shape_cast %24 : vector<8xf32> to vector<8x1xf32>
    %26 = tpu.reciprocal %25 : vector<8x1xf32> -> vector<8x1xf32>
    %27 = vector.broadcast %26 : vector<8x1xf32> to vector<8x8xf32>
    %28 = arith.mulf %23, %27 : vector<8x8xf32>
    %29 = arith.truncf %28 : vector<8x8xf32> to vector<8x8xbf16>
    %30 = arith.truncf %7 : vector<8x128xf32> to vector<8x128xbf16>
    %cst_13 = arith.constant dense<0.000000e+00> : vector<8x128xf32>
    %31 = tpu.matmul %29, %30, %cst_13 {dimension_numbers = #tpu.dot_dimension_numbers<[1], [0], [0], [1], [0, 0, 1, 1], [], []>} : vector<8x8xbf16>, vector<8x128xbf16>, vector<8x128xf32> -> vector<8x128xf32>
    %cst_14 = arith.constant 0.899999976 : f32
    %32 = vector.broadcast %cst_14 : f32 to vector<8x128xf32>
    %33 = arith.mulf %32, %7 : vector<8x128xf32>
    %cst_15 = arith.constant 1.000000e-01 : f32
    %34 = vector.broadcast %cst_15 : f32 to vector<8x128xf32>
    %35 = arith.mulf %34, %31 : vector<8x128xf32>
    %36 = arith.addf %33, %35 : vector<8x128xf32>
    %c0_16 = arith.constant 0 : index
    %c0_17 = arith.constant 0 : index
    %c0_18 = arith.constant 0 : index
    %37 = vector.load %arg5[%c0_16, %c0_17, %c0_18] : memref<1x8x128xf32, #tpu.memory_space<vmem>>, vector<1x8x128xf32>
    %38 = vector.shape_cast %37 : vector<1x8x128xf32> to vector<8x128xf32>
    %39 = vector.shape_cast %36 : vector<8x128xf32> to vector<1x8x128xf32>
    tpu.vector_store %arg5[%c0_16, %c0_17, %c0_18], %39 {strides = array<i32>} : memref<1x8x128xf32, #tpu.memory_space<vmem>>, vector<1x8x128xf32>,
    return
  }
  func.func @transform_0(%arg0: i32) -> (i32, i32, i32) {
    %c0_i32 = arith.constant 0 : i32
    %c0_i32_0 = arith.constant 0 : i32
    %c0_i32_1 = arith.constant 0 : i32
    return %arg0, %c0_i32, %c0_i32_0 : i32, i32, i32
  }
  func.func @transform_1(%arg0: i32) -> (i32, i32) {
    %c0_i32 = arith.constant 0 : i32
    %c0_i32_0 = arith.constant 0 : i32
    %c0_i32_1 = arith.constant 0 : i32
    return %c0_i32, %c0_i32_0 : i32, i32
  }
  func.func @transform_2(%arg0: i32) -> (i32, i32) {
    %c0_i32 = arith.constant 0 : i32
    %c0_i32_0 = arith.constant 0 : i32
    %c0_i32_1 = arith.constant 0 : i32
    return %c0_i32, %c0_i32_0 : i32, i32
  }
  func.func @transform_3(%arg0: i32) -> (i32, i32, i32) {
    %c0_i32 = arith.constant 0 : i32
    %c0_i32_0 = arith.constant 0 : i32
    %c0_i32_1 = arith.constant 0 : i32
    return %arg0, %c0_i32, %c0_i32_0 : i32, i32, i32
  }
  func.func @transform_4(%arg0: i32) -> (i32, i32, i32) {
    %c0_i32 = arith.constant 0 : i32
    %c0_i32_0 = arith.constant 0 : i32
    %c0_i32_1 = arith.constant 0 : i32
    return %arg0, %c0_i32, %c0_i32_0 : i32, i32, i32
  }
}

</mosaic_0001>

<llo_original>
// kernel: tpu_custom_call.1
$region0: #{tpu_custom_call.1}
  #allocation0 [shape = 'u32[]', space=smem, size = 0x4, offset = 0x4, fixed_abs, tag = 'smem constant byte address 0x4 - core index']
  #allocation1 [shape = 'u32[144,128]{1,0:T(1,128)}', space=vmem, size = 0x12000, scoped, tag = 'internal scratch']
  %s0 = inlined_call_operand.hbm [shape: bf16[2,8,32], index: 0, kind: input, shape index: {}]
  %s1 = inlined_call_operand.hbm [shape: bf16[32,129], index: 1, kind: input, shape index: {}]
  %s2 = inlined_call_operand.vmem [shape: f32[1,129], index: 2, kind: input, shape index: {}]
  %s3 = inlined_call_operand.vmem [shape: f32[2,1,8], index: 3, kind: input, shape index: {}]
  %s4 = inlined_call_operand.hbm [shape: f32[2,8,128], index: 4, kind: output, shape index: {}]
  %s5 = sld [smem:[#allocation0]]
  $region57: #{tpu_custom_call.1} parent=0
    _
  %s7 = ssub.s32 1, %s5
  %s8 = scalar_select 0, %s7, %s5
  $region1: #{tpu_custom_call.1} parent=0
    #allocation2 [shape = 'u8[4096]{0}', space=vmem, size = 0x1000, scoped, tag = 'input window, operand 0']
    #allocation3 [shape = 's32[2]{0}', space=sflag, size = 0x8, scoped, tag = 'scoped memory for tpu_custom_call.1']
    #allocation4 [shape = 's32[2]{0}', space=sflag, size = 0x8, scoped, tag = 'scoped memory for tpu_custom_call.1']
    #allocation5 [shape = 'u8[16384]{0}', space=vmem, size = 0x4000, scoped, tag = 'input window, operand 1, single buffered']
    #allocation6 [shape = 's32[1]{0}', space=sflag, size = 0x4, scoped, tag = 'scoped memory for tpu_custom_call.1']
    #allocation7 [shape = 'u8[8192]{0}', space=vmem, size = 0x2000, scoped, tag = 'output window, operand 0']
    %9 = vsyncpa [#allocation3], 0
    %s10 = scalar_lea.sflag [#allocation3], 1
    %11 = vsyncpa %s10, 0
    %12 = vsyncpa [#allocation6], 0
    %13 = vsyncpa [#allocation4], 0
    %s14 = scalar_lea.sflag [#allocation4], 1
    %15 = vsyncpa %s14, 0
    loop: start=0, step=1, limit=4
    $region2: #{tpu_custom_call.1} parent=1 // loop_pre_header
      _
    $region3: #{tpu_custom_call.1} parent=1 // loop_header
      %s17 = sphi 0, %s21
      %p18 = scmp.ge.s32.totalorder %s17, 4
      %s27 = sphi 0, %s29
      %s30 = sphi 0, %s27
      %s31 = sphi 0, %s30
      %s47 = sphi 0, %s31
      %s51 = sphi 0, %s51
      %s53 = sphi 0, %s51
      %s54 = sphi 0, %s53
      %s68 = sphi 0, %s54
      %s72 = sphi 0, %s72
      %s74 = sphi 0, %s72
      %s75 = sphi 0, %s74
      %s89 = sphi 0, %s75
      %s95 = sphi 0, %s97
      %s98 = sphi 0, %s95
      %s99 = sphi 0, %s98
      %s115 = sphi 0, %s99
      %s121 = sphi 0, %s123
      %s124 = sphi 0, %s121
      %s125 = sphi 0, %s124
      %s141 = sphi 0, %s125
    $region4: #{tpu_custom_call.1} parent=1 // loop_header_branch
      %20 = sbr.rel (%p18) target = $region8
    $region5: #{tpu_custom_call.1} parent=1 // loop_body
      %s22 = ssub.s32 %s17, 1
      %s23 = ssub.s32 %s17, 2
      %s24 = sadd.s32 %s17, 1
      %s25 = ssub.s32 %s17, %s24
      %p26 = scmp.eq.s32.totalorder %s25, 0
      %s28 = sadd.s32 %s27, 1
      %s29 = scalar_select %p26, %s27, %s28
      %p32 = pneg %p26
      %p33 = scmp.eq.s32.totalorder %s17, 1
      %p34 = por %p32, %p33
      %p35 = scmp.ne.s32.totalorder %s27, %s30
      %p36 = scmp.eq.s32.totalorder %s17, 0
      %p37 = por %p35, %p36
      %p38 = scmp.ne.s32.totalorder %s27, %s30
      %p39 = scmp.eq.s32.totalorder %s22, 1
      %p40 = por %p38, %p39
      %p41 = scmp.ne.s32.totalorder %s30, %s31
      %p42 = scmp.eq.s32.totalorder %s22, 0
      %p43 = por %p41, %p42
      %p44 = scmp.ne.s32.totalorder %s30, %s31
      %p45 = scmp.eq.s32.totalorder %s23, 1
      %p46 = por %p44, %p45
      %p48 = scmp.ne.s32.totalorder %s31, %s47
      %p49 = scmp.eq.s32.totalorder %s23, 0
      %p50 = por %p48, %p49
      %s52 = sadd.s32 %s51, 1
      %p55 = scmp.eq.s32.totalorder %s17, 1
      %p56 = scmp.ne.s32.totalorder %s51, %s53
      %p57 = scmp.eq.s32.totalorder %s17, 0
      %p58 = por %p56, %p57
      %p59 = scmp.ne.s32.totalorder %s51, %s53
      %p60 = scmp.eq.s32.totalorder %s22, 1
      %p61 = por %p59, %p60
      %p62 = scmp.ne.s32.totalorder %s53, %s54
      %p63 = scmp.eq.s32.totalorder %s22, 0
      %p64 = por %p62, %p63
      %p65 = scmp.ne.s32.totalorder %s53, %s54
      %p66 = scmp.eq.s32.totalorder %s23, 1
      %p67 = por %p65, %p66
      %p69 = scmp.ne.s32.totalorder %s54, %s68
      %p70 = scmp.eq.s32.totalorder %s23, 0
      %p71 = por %p69, %p70
      %s73 = sadd.s32 %s72, 1
      %p76 = scmp.eq.s32.totalorder %s17, 1
      %p77 = scmp.ne.s32.totalorder %s72, %s74
      %p78 = scmp.eq.s32.totalorder %s17, 0
      %p79 = por %p77, %p78
      %p80 = scmp.ne.s32.totalorder %s72, %s74
      %p81 = scmp.eq.s32.totalorder %s22, 1
      %p82 = por %p80, %p81
      %p83 = scmp.ne.s32.totalorder %s74, %s75
      %p84 = scmp.eq.s32.totalorder %s22, 0
      %p85 = por %p83, %p84
      %p86 = scmp.ne.s32.totalorder %s74, %s75
      %p87 = scmp.eq.s32.totalorder %s23, 1
      %p88 = por %p86, %p87
      %p90 = scmp.ne.s32.totalorder %s75, %s89
      %p91 = scmp.eq.s32.totalorder %s23, 0
      %p92 = por %p90, %p91
      %s93 = ssub.s32 %s17, %s24
      %p94 = scmp.eq.s32.totalorder %s93, 0
      %s96 = sadd.s32 %s95, 1
      %s97 = scalar_select %p94, %s95, %s96
      %p100 = pneg %p94
      %p101 = scmp.eq.s32.totalorder %s17, 1
      %p102 = por %p100, %p101
      %p103 = scmp.ne.s32.totalorder %s95, %s98
      %p104 = scmp.eq.s32.totalorder %s17, 0
      %p105 = por %p103, %p104
      %p106 = scmp.ne.s32.totalorder %s95, %s98
      %p107 = scmp.eq.s32.totalorder %s22, 1
      %p108 = por %p106, %p107
      %p109 = scmp.ne.s32.totalorder %s98, %s99
      %p110 = scmp.eq.s32.totalorder %s22, 0
      %p111 = por %p109, %p110
      %p112 = scmp.ne.s32.totalorder %s98, %s99
      %p113 = scmp.eq.s32.totalorder %s23, 1
      %p114 = por %p112, %p113
      %p116 = scmp.ne.s32.totalorder %s99, %s115
      %p117 = scmp.eq.s32.totalorder %s23, 0
      %p118 = por %p116, %p117
      %s119 = ssub.s32 %s17, %s24
      %p120 = scmp.eq.s32.totalorder %s119, 0
      %s122 = sadd.s32 %s121, 1
      %s123 = scalar_select %p120, %s121, %s122
      %p126 = pneg %p120
      %p127 = scmp.eq.s32.totalorder %s17, 1
      %p128 = por %p126, %p127
      %p129 = scmp.ne.s32.totalorder %s121, %s124
      %p130 = scmp.eq.s32.totalorder %s17, 0
      %p131 = por %p129, %p130
      %p132 = scmp.ne.s32.totalorder %s121, %s124
      %p133 = scmp.eq.s32.totalorder %s22, 1
      %p134 = por %p132, %p133
      %p135 = scmp.ne.s32.totalorder %s124, %s125
      %p136 = scmp.eq.s32.totalorder %s22, 0
      %p137 = por %p135, %p136
      %p138 = scmp.ne.s32.totalorder %s124, %s125
      %p139 = scmp.eq.s32.totalorder %s23, 1
      %p140 = por %p138, %p139
      %p142 = scmp.ne.s32.totalorder %s125, %s141
      %p143 = scmp.eq.s32.totalorder %s23, 0
      %p144 = por %p142, %p143
      %p145 = scmp.le.s32.totalorder 1, %s17
      %p146 = scmp.lt.s32.totalorder %s17, 3
      %p147 = pnand %p145, %p146
      %p148 = pneg %p147
      // Predicated region
      $region9: #{tpu_custom_call.1} parent=5 // pred_check
        _
      $region10: #{tpu_custom_call.1} parent=5 // pred_check_branch
        %150 = sbr.rel (%p147) target = $region12
      $region11: #{tpu_custom_call.1} parent=5 // pred_region
        %s151 = ssub.s32 %s17, 1
        // Predicated region
        $region13: #{tpu_custom_call.1} parent=11 // pred_check
          %p152 = pneg %p64
        $region14: #{tpu_custom_call.1} parent=11 // pred_check_branch
          %154 = sbr.rel (%p152) target = $region16
        $region15: #{tpu_custom_call.1} parent=11 // pred_region
          %s156 = ssub.s32 512, 512
          %157 = vsyncadd [#allocation6], %s156
          %s158 = sshll.u32 [#allocation5], 4
          %s159 = int_to_ptr.vmem [resolvable:$true] %s158
          %164 = dma.hbm_to_vmem [thread:$0]  %s1, 512, %s159, [#allocation6], 128, 128, 8
        $region16: #{tpu_custom_call.1} parent=11 // pred_fallthru
          _
        // Predicated region
        $region17: #{tpu_custom_call.1} parent=11 // pred_check
          %p165 = pneg %p85
        $region18: #{tpu_custom_call.1} parent=11 // pred_check_branch
          %167 = sbr.rel (%p165) target = $region20
        $region19: #{tpu_custom_call.1} parent=11 // pred_region
          _
        $region20: #{tpu_custom_call.1} parent=11 // pred_fallthru
          _
      $region12: #{tpu_custom_call.1} parent=5 // pred_fallthru
        _
      %p168 = scmp.lt.s32.totalorder %s17, 2
      // Predicated region
      $region21: #{tpu_custom_call.1} parent=5 // pred_check
        %p169 = pneg %p168
      $region22: #{tpu_custom_call.1} parent=5 // pred_check_branch
        %171 = sbr.rel (%p169) target = $region24
      $region23: #{tpu_custom_call.1} parent=5 // pred_region
        // Predicated region
        $region25: #{tpu_custom_call.1} parent=23 // pred_check
          %p172 = pneg %p37
        $region26: #{tpu_custom_call.1} parent=23 // pred_check_branch
          %174 = sbr.rel (%p172) target = $region28
        $region27: #{tpu_custom_call.1} parent=23 // pred_region
          %s175 = sand.u32 %s27, 1
          %s176 = scalar_lea.sflag [#allocation3], %s175
          %s177 = sand.u32 %s27, 1
          %s178 = smul.addr %s177, 4
          %s179 = scalar_lea.vmem [#allocation2], %s178
          %s181 = ssub.s32 64, 64
          %182 = vsyncadd %s176, %s181
          %s183 = smul.addr %s17, 64
          %s184 = scalar_lea.hbm %s0, %s183
          %s186 = sshll.u32 %s179, 4
          %s187 = int_to_ptr.vmem [resolvable:$true] %s186
          %189 = dma.hbm_to_vmem [thread:$0]  %s184, 64, %s187, %s176
        $region28: #{tpu_custom_call.1} parent=23 // pred_fallthru
          _
        // Predicated region
        $region29: #{tpu_custom_call.1} parent=23 // pred_check
          %p190 = pneg %p105
        $region30: #{tpu_custom_call.1} parent=23 // pred_check_branch
          %192 = sbr.rel (%p190) target = $region32
        $region31: #{tpu_custom_call.1} parent=23 // pred_region
          %p193 = scmp.lt.s32.totalorder %s17, 1
          %s194 = scalar_select %p193, %s17, 1
          %s195 = scalar_lea.vmem %s3, %s194
        $region32: #{tpu_custom_call.1} parent=23 // pred_fallthru
          _
      $region24: #{tpu_custom_call.1} parent=5 // pred_fallthru
        _
      %p196 = scmp.le.s32.totalorder 1, %s17
      %p197 = scmp.lt.s32.totalorder %s17, 3
      %p198 = pnand %p196, %p197
      %p199 = pneg %p198
      // Predicated region
      $region33: #{tpu_custom_call.1} parent=5 // pred_check
        _
      $region34: #{tpu_custom_call.1} parent=5 // pred_check_branch
        %201 = sbr.rel (%p198) target = $region36
      $region35: #{tpu_custom_call.1} parent=5 // pred_region
        %s202 = ssub.s32 %s17, 1
        %s203 = sand.u32 %s30, 1
        %s204 = scalar_lea.sflag [#allocation3], %s203
        %s205 = sand.u32 %s30, 1
        %s206 = smul.addr %s205, 4
        %s207 = scalar_lea.vmem [#allocation2], %s206
        // Predicated region
        $region37: #{tpu_custom_call.1} parent=35 // pred_check
          %p208 = pneg %p43
        $region38: #{tpu_custom_call.1} parent=35 // pred_check_branch
          %210 = sbr.rel (%p208) target = $region40
        $region39: #{tpu_custom_call.1} parent=35 // pred_region
          %211 = dma.done %s204, 64
        $region40: #{tpu_custom_call.1} parent=35 // pred_fallthru
          _
        // Predicated region
        $region41: #{tpu_custom_call.1} parent=35 // pred_check
          %p212 = pneg %p64
        $region42: #{tpu_custom_call.1} parent=35 // pred_check_branch
          %214 = sbr.rel (%p212) target = $region44
        $region43: #{tpu_custom_call.1} parent=35 // pred_region
          %215 = dma.done [#allocation6], 512
        $region44: #{tpu_custom_call.1} parent=35 // pred_fallthru
          _
        %s216 = sand.u32 %s30, 1
        %s217 = scalar_lea.sflag [#allocation3], %s216
        %s218 = sand.u32 %s30, 1
        %s219 = smul.addr %s218, 4
        %s220 = scalar_lea.vmem [#allocation2], %s219
        %p221 = pneg %p43
        %p222 = pneg %p40
        %p223 = pneg %p64
        %p224 = pneg %p61
        %p225 = pneg %p85
        %p226 = pneg %p82
        %p227 = scmp.lt.s32.totalorder %s22, 1
        %s228 = scalar_select %p227, %s22, 1
        %s229 = scalar_lea.vmem %s3, %s228
        %p230 = pneg %p111
        %p231 = pneg %p108
        %p232 = pneg %p137
        %p233 = pneg %p134
        %s234 = sand.u32 %s124, 1
        %s235 = scalar_lea.sflag [#allocation4], %s234
        %s236 = sand.u32 %s124, 1
        %s237 = smul.addr %s236, 8
        %s238 = scalar_lea.vmem [#allocation7], %s237
        %p239 = scmp.lt.s32.totalorder %s22, 1
        %s240 = scalar_select %p239, %s22, 1
        %s241 = scalar_lea.vmem %s3, %s240
        %v243 = vld [vmem:[%s207] sm:$0xf]
        %v244 = vld [vmem:[#allocation5] sm:$0xff]
        %v245 = vld [vmem:[#allocation5 + $0x8] sm:$0xff]
        %v246 = vld [vmem:[#allocation5 + $0x10] sm:$0xff]
        %v247 = vld [vmem:[#allocation5 + $0x18] sm:$0xff]
        %v248 = vld [vmem:[%s2] sm:$0x3]
        %v250 = vlaneseq
        %v251 = vshrl.u32 %v250, 7
        %v252 = vsub.s32 0, %v251
        %v253 = vrot.slane %v248, %v252
        %v254 = vlaneseq
        %v255 = vshrl.u32 %v254, 7
        %v256 = vsub.s32 1, %v255
        %v257 = vrot.slane %v248, %v256
        %v264 = vunpack.c.l.b16 %v244
        %v265 = vunpack.c.h.b16 %v244
        %v266 = vunpack.c.l.b16 %v245
        %v267 = vunpack.c.h.b16 %v245
        %v268 = vunpack.c.l.b16 %v246
        %v269 = vunpack.c.h.b16 %v246
        %v270 = vunpack.c.l.b16 %v247
        %v271 = vunpack.c.h.b16 %v247
        %v272 = vpack.c.b16 %v266, %v264
        %v273 = vpack.c.b16 %v267, %v265
        %v274 = vpack.c.b16 %v270, %v268
        %v275 = vpack.c.b16 %v271, %v269
        %vm280 = vcmask 261120
        %v282 = vsel %vm280, %v243, 0
        %284 = vmatprep.subr.bf16.mxu0 0
        %285 = vmatpush1.bf16.msra.mxu0 0
        %286 = vmatprep.subr.bf16.mxu0 0
        %287 = vmatpush1.bf16.msra.mxu0 0
        %288 = vmatprep.subr.bf16.mxu0 0
        %289 = vmatpush1.bf16.msra.mxu0 0
        %290 = vmatprep.subr.bf16.mxu0 0
        %291 = vmatpush1.bf16.msra.mxu0 0
        %292 = vmatprep.subr.bf16.mxu0 0
        %293 = vmatpush1.bf16.msra.mxu0 0
        %294 = vmatprep.subr.bf16.mxu0 0
        %295 = vmatpush1.bf16.msra.mxu0 0
        %296 = vmatprep.subr.bf16.mxu0 %v275
        %297 = vmatpush1.bf16.msra.mxu0 %v274
        %298 = vmatprep.subr.bf16.mxu0 %v273
        %299 = vmatpush1.bf16.msra.mxu0 %v272
        %300 = vmatprep.subr.bf16.mxu0 0
        %301 = vmatpush2.bf16.msra.mxu0 0
        %302 = vmatprep.subr.bf16.mxu0 0
        %303 = vmatpush2.bf16.msra.mxu0 0
        %304 = vmatprep.subr.bf16.mxu0 0
        %305 = vmatpush2.bf16.msra.mxu0 0
        %306 = vmatprep.subr.bf16.mxu0 0
        %307 = vmatpush2.bf16.msra.mxu0 0
        %308 = vmatprep.subr.bf16.mxu0 0
        %309 = vmatpush2.bf16.msra.mxu0 0
        %310 = vmatprep.subr.bf16.mxu0 0
        %311 = vmatpush2.bf16.msra.mxu0 0
        %312 = vmatprep.subr.bf16.mxu0 0
        %313 = vmatpush2.bf16.msra.mxu0 0
        %314 = vmatprep.subr.bf16.mxu0 0
        %315 = vmatpush2.bf16.msra.mxu0 0
        %316 = vmatprep.mubr.bf16.mxu0 0
        %317 = vmatmul.mubr.bf16.gmra.mxu0 %v282
        %v318 = vpop.f32.mrf.mxu0
        %v319 = vadd.f32 %v253, %v318
        %v320 = vpop.f32.mrf.mxu0
        %v321 = vadd.f32 %v257, %v320
        %v322 = vpop.f32.mrf.mxu0
        %v323 = vpop.f32.mrf.mxu0
        %324 = vdwg.mxu0
        %v325 = vld [vmem:[%s241] sm:$0x1]
        %327 = vset.pattern.permute.xlu0 0
        %328 = vperm.xlu0 %327, %v321
        %v329 = vpop.permute.xlu0 %328
        %v332 = vlaneseq
        %v333 = vshrl.u32 %v332, 7
        %v334 = vsub.s32 0, %v333
        %v335 = vrot.slane %v325, %v334
        %v337 = vadd.f32 %v329, %v335
        %vm338 = vcmp.ge.f32.partialorder %v337, 0.0
        %v339 = vmul.f32 %v337, 0.2
        %v340 = vsel %vm338, %v337, %v339
        %vm341 = vcmask 64512
        %v342 = vsel %vm341, %v340, -inf
        %343 = vmax.xlane.f32.xlu0 %v342
        %v344 = vpop.xlane.xlu0 %343
        %v345 = vsub.f32 %v340, %v344
        %v346 = vmul.f32 %v345, 1.442695
        %v347 = vpow.pop %v346
        %v348 = vsel %vm341, %v347, 0.0
        %349 = vadd.xlane.f32.xlu0 %v348
        %v350 = vpop.xlane.xlu0 %349
        %v351 = vrcp.pop %v350
        %v352 = vmul.f32 %v347, %v351
        %v353 = vpack.c.bf16 %v352, %v352
        %v354 = vpack.c.bf16 %v319, %v319
        %v356 = vsel %vm341, %v353, 0
        %vm358 = vcmask 1043456
        %v360 = vsel %vm358, %v354, 0
        %362 = vmatprep.subr.bf16.mxu0 0
        %363 = vmatpush1.bf16.msra.mxu0 0
        %364 = vmatprep.subr.bf16.mxu0 0
        %365 = vmatpush1.bf16.msra.mxu0 0
        %366 = vmatprep.subr.bf16.mxu0 0
        %367 = vmatpush1.bf16.msra.mxu0 0
        %368 = vmatprep.subr.bf16.mxu0 0
        %369 = vmatpush1.bf16.msra.mxu0 0
        %370 = vmatprep.subr.bf16.mxu0 0
        %371 = vmatpush1.bf16.msra.mxu0 0
        %372 = vmatprep.subr.bf16.mxu0 0
        %373 = vmatpush1.bf16.msra.mxu0 0
        %374 = vmatprep.subr.bf16.mxu0 0
        %375 = vmatpush1.bf16.msra.mxu0 0
        %376 = vmatprep.subr.bf16.mxu0 0
        %377 = vmatpush1.bf16.msra.mxu0 %v360
        %378 = vmatprep.subr.bf16.mxu0 0
        %379 = vmatpush2.bf16.msra.mxu0 0
        %380 = vmatprep.subr.bf16.mxu0 0
        %381 = vmatpush2.bf16.msra.mxu0 0
        %382 = vmatprep.subr.bf16.mxu0 0
        %383 = vmatpush2.bf16.msra.mxu0 0
        %384 = vmatprep.subr.bf16.mxu0 0
        %385 = vmatpush2.bf16.msra.mxu0 0
        %386 = vmatprep.subr.bf16.mxu0 0
        %387 = vmatpush2.bf16.msra.mxu0 0
        %388 = vmatprep.subr.bf16.mxu0 0
        %389 = vmatpush2.bf16.msra.mxu0 0
        %390 = vmatprep.subr.bf16.mxu0 0
        %391 = vmatpush2.bf16.msra.mxu0 0
        %392 = vmatprep.subr.bf16.mxu0 0
        %393 = vmatpush2.bf16.msra.mxu0 0
        %394 = vmatprep.mubr.bf16.mxu0 0
        %395 = vmatmul.mubr.bf16.gmra.mxu0 %v356
        %v396 = vpop.f32.mrf.mxu0
        %v397 = vadd.f32 0.0, %v396
        %v398 = vpop.f32.mrf.mxu0
        %v399 = vpop.f32.mrf.mxu0
        %v400 = vpop.f32.mrf.mxu0
        %401 = vdwg.mxu0
        %v402 = vmul.f32 %v319, 0.9
        %v403 = vmul.f32 %v397, 0.1
        %v404 = vadd.f32 %v402, %v403
        %405 = vst [vmem:[%s238] sm:$0xff] %v404
        %s406 = sand.u32 %s124, 1
        %s407 = scalar_lea.sflag [#allocation4], %s406
        %s408 = sand.u32 %s124, 1
        %s409 = smul.addr %s408, 8
        %s410 = scalar_lea.vmem [#allocation7], %s409
        // Predicated region
        $region45: #{tpu_custom_call.1} parent=35 // pred_check
          %p411 = pneg %p134
        $region46: #{tpu_custom_call.1} parent=35 // pred_check_branch
          %413 = sbr.rel (%p411) target = $region48
        $region47: #{tpu_custom_call.1} parent=35 // pred_region
          %s415 = ssub.s32 128, 128
          %416 = vsyncadd %s407, %s415
          %s417 = smul.addr %s22, 128
          %s418 = scalar_lea.hbm %s4, %s417
          %s420 = sshll.u32 %s410, 4
          %s421 = int_to_ptr.vmem [resolvable:$true] %s420
          %423 = dma.vmem_to_hbm [thread:$0]  %s421, 128, %s418, %s407
        $region48: #{tpu_custom_call.1} parent=35 // pred_fallthru
          _
      $region36: #{tpu_custom_call.1} parent=5 // pred_fallthru
        _
      %p424 = scmp.le.s32.totalorder 2, %s17
      // Predicated region
      $region49: #{tpu_custom_call.1} parent=5 // pred_check
        %p425 = pneg %p424
      $region50: #{tpu_custom_call.1} parent=5 // pred_check_branch
        %427 = sbr.rel (%p425) target = $region52
      $region51: #{tpu_custom_call.1} parent=5 // pred_region
        %s428 = ssub.s32 %s17, 2
        // Predicated region
        $region53: #{tpu_custom_call.1} parent=51 // pred_check
          %p429 = pneg %p140
        $region54: #{tpu_custom_call.1} parent=51 // pred_check_branch
          %431 = sbr.rel (%p429) target = $region56
        $region55: #{tpu_custom_call.1} parent=51 // pred_region
          %s432 = sand.u32 %s125, 1
          %s433 = scalar_lea.sflag [#allocation4], %s432
          %s434 = sand.u32 %s125, 1
          %s435 = smul.addr %s434, 8
          %s436 = scalar_lea.vmem [#allocation7], %s435
          %437 = dma.done %s433, 128
        $region56: #{tpu_custom_call.1} parent=51 // pred_fallthru
          _
      $region52: #{tpu_custom_call.1} parent=5 // pred_fallthru
        _
    $region6: #{tpu_custom_call.1} parent=1 // loop_footer
      %s21 = sadd.s32 1, %s17
    $region7: #{tpu_custom_call.1} parent=1 // loop_footer_branch
      %16 = sbr.rel target = $region3
    $region8: #{tpu_custom_call.1} parent=1 // loop_exit
      _
    %438 = vsyncpa [#allocation3], 1
    %s439 = scalar_lea.sflag [#allocation3], 1
    %440 = vsyncpa %s439, 1
    %441 = vsyncpa [#allocation6], 1
    %442 = vsyncpa [#allocation4], 1
    %s443 = scalar_lea.sflag [#allocation4], 1
    %444 = vsyncpa %s443, 1

</llo_original>
